<compile_context>
chip_gen: v5e
topology: v5e:2x2
jax: 0.10.0
libtpu: 0.0.40
codegen_flags: <defaults>
</compile_context>

<pallas_src>
import jax
import jax.numpy as jnp
from jax.experimental import pallas as pl
from jax.experimental.pallas import tpu as pltpu


def _make_grid_pe_kernel(H, W):
    """Kernel writing one channel half of the (2F, H*W) lane-dense slab."""

    def kernel(col_t_ref, row_t_ref, out_ref):
        # col_t_ref: (F, W) = col_embed.weight[:W].T
        # row_t_ref: (F, H) = row_embed.weight[:H].T
        # out_ref:   (F, H*W) -- one channel half, dense along lanes
        F = col_t_ref.shape[0]
        half = pl.program_id(0)

        @pl.when(half == 0)
        def _():
            # out[c, h*W + w] = col_t[c, w]  -> tile the W-wide pattern H times.
            col = col_t_ref[...]                       # (F, W), held in vregs
            for h in range(H):                         # static unroll (H <= 50)
                out_ref[:, pl.ds(h * W, W)] = col

        @pl.when(half == 1)
        def _():
            # out[c, h*W + w] = row_t[c, h]  -> each row value repeated W times.
            row = row_t_ref[...]                       # (F, H)
            for h in range(H):                         # static unroll (H <= 50)
                out_ref[:, pl.ds(h * W, W)] = jnp.broadcast_to(
                    row[:, h][:, None], (F, W))

    return kernel


def _padded_bytes(rows, cols, itemsize):
    """(8,128)-style padded VMEM size of a 2-D f32/bf16/i8 block."""
    sublane = {4: 8, 2: 16, 1: 32}.get(itemsize, 8)
    pr = -(-rows // sublane) * sublane
    pc = -(-cols // 128) * 128
    return pr * pc * itemsize


def grid_pe_learned(x, row_embed_weight, col_embed_weight):
    """x: (B, C, H, W).  Returns pos: (B, 2F, H, W), matching PyTorch."""
    B = x.shape[0]
    H, W = x.shape[-2], x.shape[-1]
    F = row_embed_weight.shape[-1]
    dtype = row_embed_weight.dtype
    itemsize = jnp.dtype(dtype).itemsize

    # nn.Embedding(50, F) indexed with arange(h)/arange(w): out-of-range would
    # raise in PyTorch, so make truncation an explicit error here.
    if H > row_embed_weight.shape[0] or W > col_embed_weight.shape[0]:
        raise ValueError(
            f"H={H}, W={W} exceed the embedding table size "
            f"({row_embed_weight.shape[0]} / {col_embed_weight.shape[0]}).")
    if F % 8 != 0:
        # TODO(synk): support non-sublane-multiple F via a single-block grid.
        raise ValueError(f"num_pos_feats={F} must be a multiple of 8.")

    # Embedding lookup with arange == slicing the first rows; transpose the
    # tiny (<=50 x F) tables so the kernel stores channel-major directly.
    col_t = col_embed_weight[:W].T            # (F, W)
    row_t = row_embed_weight[:H].T            # (F, H)

    HW = H * W
    slab_bytes = 2 * F * HW * itemsize
    in_bytes = (F * W + F * H) * itemsize

    # Padding-aware VMEM budget: double-buffered out block + double-buffered
    # inputs + headroom; floored at 16 MiB (safe everywhere), capped at 48 MiB.
    out_blk_pad = _padded_bytes(F, HW, itemsize)
    in_blk_pad = _padded_bytes(F, W, itemsize) + _padded_bytes(F, H, itemsize)
    vmem_limit = int(min(max(2 * out_blk_pad + 2 * in_blk_pad + (4 << 20),
                             16 << 20), 48 << 20))

    slab = pl.pallas_call(
        _make_grid_pe_kernel(H, W),
        out_shape=jax.ShapeDtypeStruct((2 * F, HW), dtype),
        grid_spec=pltpu.PrefetchScalarGridSpec(
            num_scalar_prefetch=0,
            grid=(2,),                                    # col half, row half
            in_specs=[
                pl.BlockSpec((F, W), lambda c: (0, 0)),   # full col table
                pl.BlockSpec((F, H), lambda c: (0, 0)),   # full row table
            ],
            out_specs=pl.BlockSpec((F, HW), lambda c: (c, 0)),
        ),
        compiler_params=pltpu.CompilerParams(
            dimension_semantics=("parallel",),
            vmem_limit_bytes=vmem_limit,
        ),
        cost_estimate=pl.CostEstimate(
            flops=0,
            transcendentals=0,
            bytes_accessed=slab_bytes + 2 * in_bytes,
        ),
    )(col_t, row_t)

    # (2F, H*W) -> (2F, H, W): identical row-major bytes, so this reshape is
    # free.  Batch-invariant slab -> broadcast over B (fuses downstream).
    pos = slab.reshape(2 * F, H, W)
    return jnp.broadcast_to(pos[None], (B, 2 * F, H, W))


def reference(x, row_embed_weight, col_embed_weight):
    """Pure-JAX reference mirroring the PyTorch forward."""
    B = x.shape[0]
    H, W = x.shape[-2], x.shape[-1]
    x_emb = col_embed_weight[:W]                         # (W, F)
    y_emb = row_embed_weight[:H]                         # (H, F)
    pos = jnp.concatenate(
        [jnp.broadcast_to(x_emb[None, :, :], (H, W, x_emb.shape[-1])),
         jnp.broadcast_to(y_emb[:, None, :], (H, W, y_emb.shape[-1]))],
        axis=-1)                                         # (H, W, 2F)
    pos = jnp.transpose(pos, (2, 0, 1))[None]            # (1, 2F, H, W)
    return jnp.broadcast_to(pos, (B,) + pos.shape[1:])


if __name__ == "__main__":
    key = jax.random.PRNGKey(0)
    k_row, k_col, k_x = jax.random.split(key, 3)

    num_pos_feats = 32          # module default is 256; small for the demo
    B, C, H, W = 2, 4, 16, 16

    # nn.init.uniform_ -> U[0, 1), deterministic here via PRNGKey(0)
    row_embed_weight = jax.random.uniform(k_row, (50, num_pos_feats), jnp.float32)
    col_embed_weight = jax.random.uniform(k_col, (50, num_pos_feats), jnp.float32)

    x = jax.random.normal(k_x, (B, C, H, W), jnp.float32)

    pos = grid_pe_learned(x, row_embed_weight, col_embed_weight)
    pos = jax.block_until_ready(pos)

    ref = reference(x, row_embed_weight, col_embed_weight)
    assert pos.shape == (B, 2 * num_pos_feats, H, W), pos.shape
    assert jnp.allclose(pos, ref), "mismatch vs reference"

    print("KERNEL_OK")
</pallas_src>

<mosaic_0001>
module attributes {stable_mosaic.version = 11 : i64} {
  func.func @kernel(%arg0: i32, %arg1: memref<32x16xf32, #tpu.memory_space<vmem>>, %arg2: memref<32x16xf32, #tpu.memory_space<vmem>>, %arg3: memref<32x256xf32, #tpu.memory_space<vmem>>) attributes {dimension_semantics = [#tpu.dimension_semantics<parallel>], iteration_bounds = array<i64: 2>, scalar_prefetch = 0 : i64, scratch_operands = 0 : i64, tpu.core_type = #tpu.core_type<tc>, window_params = [{pipeline_mode = #tpu.pipeline_mode<synchronous>, transform_indices = @transform_0, window_bounds = array<i64: 32, 16>}, {pipeline_mode = #tpu.pipeline_mode<synchronous>, transform_indices = @transform_1, window_bounds = array<i64: 32, 16>}, {transform_indices = @transform_2, window_bounds = array<i64: 32, 256>}]} {
    %c0_i32 = arith.constant 0 : i32
    %0 = arith.cmpi eq, %arg0, %c0_i32 : i32
    %1 = arith.extui %0 : i1 to i32
    %c0_i32_0 = arith.constant 0 : i32
    %2 = arith.cmpi ne, %1, %c0_i32_0 : i32
    scf.if %2 {
      %c0 = arith.constant 0 : index
      %c0_2 = arith.constant 0 : index
      %6 = vector.load %arg1[%c0, %c0_2] : memref<32x16xf32, #tpu.memory_space<vmem>>, vector<32x16xf32>
      %c0_3 = arith.constant 0 : index
      %c0_4 = arith.constant 0 : index
      %7 = vector.load %arg3[%c0_3, %c0_4] : memref<32x256xf32, #tpu.memory_space<vmem>>, vector<32x16xf32>
      tpu.vector_store %arg3[%c0_3, %c0_4], %6 {strides = array<i32>} : memref<32x256xf32, #tpu.memory_space<vmem>>, vector<32x16xf32>,
      %c0_5 = arith.constant 0 : index
      %c16 = arith.constant 16 : index
      %8 = vector.load %arg3[%c0_5, %c16] : memref<32x256xf32, #tpu.memory_space<vmem>>, vector<32x16xf32>
      tpu.vector_store %arg3[%c0_5, %c16], %6 {strides = array<i32>} : memref<32x256xf32, #tpu.memory_space<vmem>>, vector<32x16xf32>,
      %c0_6 = arith.constant 0 : index
      %c32 = arith.constant 32 : index
      %9 = vector.load %arg3[%c0_6, %c32] : memref<32x256xf32, #tpu.memory_space<vmem>>, vector<32x16xf32>
      tpu.vector_store %arg3[%c0_6, %c32], %6 {strides = array<i32>} : memref<32x256xf32, #tpu.memory_space<vmem>>, vector<32x16xf32>,
      %c0_7 = arith.constant 0 : index
      %c48 = arith.constant 48 : index
      %10 = vector.load %arg3[%c0_7, %c48] : memref<32x256xf32, #tpu.memory_space<vmem>>, vector<32x16xf32>
      tpu.vector_store %arg3[%c0_7, %c48], %6 {strides = array<i32>} : memref<32x256xf32, #tpu.memory_space<vmem>>, vector<32x16xf32>,
      %c0_8 = arith.constant 0 : index
      %c64 = arith.constant 64 : index
      %11 = vector.load %arg3[%c0_8, %c64] : memref<32x256xf32, #tpu.memory_space<vmem>>, vector<32x16xf32>
      tpu.vector_store %arg3[%c0_8, %c64], %6 {strides = array<i32>} : memref<32x256xf32, #tpu.memory_space<vmem>>, vector<32x16xf32>,
      %c0_9 = arith.constant 0 : index
      %c80 = arith.constant 80 : index
      %12 = vector.load %arg3[%c0_9, %c80] : memref<32x256xf32, #tpu.memory_space<vmem>>, vector<32x16xf32>
      tpu.vector_store %arg3[%c0_9, %c80], %6 {strides = array<i32>} : memref<32x256xf32, #tpu.memory_space<vmem>>, vector<32x16xf32>,
      %c0_10 = arith.constant 0 : index
      %c96 = arith.constant 96 : index
      %13 = vector.load %arg3[%c0_10, %c96] : memref<32x256xf32, #tpu.memory_space<vmem>>, vector<32x16xf32>
      tpu.vector_store %arg3[%c0_10, %c96], %6 {strides = array<i32>} : memref<32x256xf32, #tpu.memory_space<vmem>>, vector<32x16xf32>,
      %c0_11 = arith.constant 0 : index
      %c112 = arith.constant 112 : index
      %14 = vector.load %arg3[%c0_11, %c112] : memref<32x256xf32, #tpu.memory_space<vmem>>, vector<32x16xf32>
      tpu.vector_store %arg3[%c0_11, %c112], %6 {strides = array<i32>} : memref<32x256xf32, #tpu.memory_space<vmem>>, vector<32x16xf32>,
      %c0_12 = arith.constant 0 : index
      %c128 = arith.constant 128 : index
      %15 = vector.load %arg3[%c0_12, %c128] : memref<32x256xf32, #tpu.memory_space<vmem>>, vector<32x16xf32>
      tpu.vector_store %arg3[%c0_12, %c128], %6 {strides = array<i32>} : memref<32x256xf32, #tpu.memory_space<vmem>>, vector<32x16xf32>,
      %c0_13 = arith.constant 0 : index
      %c144 = arith.constant 144 : index
      %16 = vector.load %arg3[%c0_13, %c144] : memref<32x256xf32, #tpu.memory_space<vmem>>, vector<32x16xf32>
      tpu.vector_store %arg3[%c0_13, %c144], %6 {strides = array<i32>} : memref<32x256xf32, #tpu.memory_space<vmem>>, vector<32x16xf32>,
      %c0_14 = arith.constant 0 : index
      %c160 = arith.constant 160 : index
      %17 = vector.load %arg3[%c0_14, %c160] : memref<32x256xf32, #tpu.memory_space<vmem>>, vector<32x16xf32>
      tpu.vector_store %arg3[%c0_14, %c160], %6 {strides = array<i32>} : memref<32x256xf32, #tpu.memory_space<vmem>>, vector<32x16xf32>,
      %c0_15 = arith.constant 0 : index
      %c176 = arith.constant 176 : index
      %18 = vector.load %arg3[%c0_15, %c176] : memref<32x256xf32, #tpu.memory_space<vmem>>, vector<32x16xf32>
      tpu.vector_store %arg3[%c0_15, %c176], %6 {strides = array<i32>} : memref<32x256xf32, #tpu.memory_space<vmem>>, vector<32x16xf32>,
      %c0_16 = arith.constant 0 : index
      %c192 = arith.constant 192 : index
      %19 = vector.load %arg3[%c0_16, %c192] : memref<32x256xf32, #tpu.memory_space<vmem>>, vector<32x16xf32>
      tpu.vector_store %arg3[%c0_16, %c192], %6 {strides = array<i32>} : memref<32x256xf32, #tpu.memory_space<vmem>>, vector<32x16xf32>,
      %c0_17 = arith.constant 0 : index
      %c208 = arith.constant 208 : index
      %20 = vector.load %arg3[%c0_17, %c208] : memref<32x256xf32, #tpu.memory_space<vmem>>, vector<32x16xf32>
      tpu.vector_store %arg3[%c0_17, %c208], %6 {strides = array<i32>} : memref<32x256xf32, #tpu.memory_space<vmem>>, vector<32x16xf32>,
      %c0_18 = arith.constant 0 : index
      %c224 = arith.constant 224 : index
      %21 = vector.load %arg3[%c0_18, %c224] : memref<32x256xf32, #tpu.memory_space<vmem>>, vector<32x16xf32>
      tpu.vector_store %arg3[%c0_18, %c224], %6 {strides = array<i32>} : memref<32x256xf32, #tpu.memory_space<vmem>>, vector<32x16xf32>,
      %c0_19 = arith.constant 0 : index
      %c240 = arith.constant 240 : index
      %22 = vector.load %arg3[%c0_19, %c240] : memref<32x256xf32, #tpu.memory_space<vmem>>, vector<32x16xf32>
      tpu.vector_store %arg3[%c0_19, %c240], %6 {strides = array<i32>} : memref<32x256xf32, #tpu.memory_space<vmem>>, vector<32x16xf32>,
    } else {
    }
    %c1_i32 = arith.constant 1 : i32
    %3 = arith.cmpi eq, %arg0, %c1_i32 : i32
    %4 = arith.extui %3 : i1 to i32
    %c0_i32_1 = arith.constant 0 : i32
    %5 = arith.cmpi ne, %4, %c0_i32_1 : i32
    scf.if %5 {
      %c0 = arith.constant 0 : index
      %c0_2 = arith.constant 0 : index
      %6 = vector.load %arg2[%c0, %c0_2] : memref<32x16xf32, #tpu.memory_space<vmem>>, vector<32x16xf32>
      %7 = vector.extract_strided_slice %6 {offsets = [0, 0], sizes = [32, 1], strides = [1, 1]} : vector<32x16xf32> to vector<32x1xf32>
      %8 = vector.shape_cast %7 : vector<32x1xf32> to vector<32xf32>
      %9 = vector.shape_cast %8 : vector<32xf32> to vector<32x1xf32>
      %10 = vector.shape_cast %9 : vector<32x1xf32> to vector<32x1xf32>
      %11 = vector.broadcast %10 : vector<32x1xf32> to vector<32x16xf32>
      %c0_3 = arith.constant 0 : index
      %c0_4 = arith.constant 0 : index
      %12 = vector.load %arg3[%c0_3, %c0_4] : memref<32x256xf32, #tpu.memory_space<vmem>>, vector<32x16xf32>
      tpu.vector_store %arg3[%c0_3, %c0_4], %11 {strides = array<i32>} : memref<32x256xf32, #tpu.memory_space<vmem>>, vector<32x16xf32>,
      %13 = vector.extract_strided_slice %6 {offsets = [0, 1], sizes = [32, 1], strides = [1, 1]} : vector<32x16xf32> to vector<32x1xf32>
      %14 = vector.shape_cast %13 : vector<32x1xf32> to vector<32xf32>
      %15 = vector.shape_cast %14 : vector<32xf32> to vector<32x1xf32>
      %16 = vector.shape_cast %15 : vector<32x1xf32> to vector<32x1xf32>
      %17 = vector.broadcast %16 : vector<32x1xf32> to vector<32x16xf32>
      %c0_5 = arith.constant 0 : index
      %c16 = arith.constant 16 : index
      %18 = vector.load %arg3[%c0_5, %c16] : memref<32x256xf32, #tpu.memory_space<vmem>>, vector<32x16xf32>
      tpu.vector_store %arg3[%c0_5, %c16], %17 {strides = array<i32>} : memref<32x256xf32, #tpu.memory_space<vmem>>, vector<32x16xf32>,
      %19 = vector.extract_strided_slice %6 {offsets = [0, 2], sizes = [32, 1], strides = [1, 1]} : vector<32x16xf32> to vector<32x1xf32>
      %20 = vector.shape_cast %19 : vector<32x1xf32> to vector<32xf32>
      %21 = vector.shape_cast %20 : vector<32xf32> to vector<32x1xf32>
      %22 = vector.shape_cast %21 : vector<32x1xf32> to vector<32x1xf32>
      %23 = vector.broadcast %22 : vector<32x1xf32> to vector<32x16xf32>
      %c0_6 = arith.constant 0 : index
      %c32 = arith.constant 32 : index
      %24 = vector.load %arg3[%c0_6, %c32] : memref<32x256xf32, #tpu.memory_space<vmem>>, vector<32x16xf32>
      tpu.vector_store %arg3[%c0_6, %c32], %23 {strides = array<i32>} : memref<32x256xf32, #tpu.memory_space<vmem>>, vector<32x16xf32>,
      %25 = vector.extract_strided_slice %6 {offsets = [0, 3], sizes = [32, 1], strides = [1, 1]} : vector<32x16xf32> to vector<32x1xf32>
      %26 = vector.shape_cast %25 : vector<32x1xf32> to vector<32xf32>
      %27 = vector.shape_cast %26 : vector<32xf32> to vector<32x1xf32>
      %28 = vector.shape_cast %27 : vector<32x1xf32> to vector<32x1xf32>
      %29 = vector.broadcast %28 : vector<32x1xf32> to vector<32x16xf32>
      %c0_7 = arith.constant 0 : index
      %c48 = arith.constant 48 : index
      %30 = vector.load %arg3[%c0_7, %c48] : memref<32x256xf32, #tpu.memory_space<vmem>>, vector<32x16xf32>
      tpu.vector_store %arg3[%c0_7, %c48], %29 {strides = array<i32>} : memref<32x256xf32, #tpu.memory_space<vmem>>, vector<32x16xf32>,
      %31 = vector.extract_strided_slice %6 {offsets = [0, 4], sizes = [32, 1], strides = [1, 1]} : vector<32x16xf32> to vector<32x1xf32>
      %32 = vector.shape_cast %31 : vector<32x1xf32> to vector<32xf32>
      %33 = vector.shape_cast %32 : vector<32xf32> to vector<32x1xf32>
      %34 = vector.shape_cast %33 : vector<32x1xf32> to vector<32x1xf32>
      %35 = vector.broadcast %34 : vector<32x1xf32> to vector<32x16xf32>
      %c0_8 = arith.constant 0 : index
      %c64 = arith.constant 64 : index
      %36 = vector.load %arg3[%c0_8, %c64] : memref<32x256xf32, #tpu.memory_space<vmem>>, vector<32x16xf32>
      tpu.vector_store %arg3[%c0_8, %c64], %35 {strides = array<i32>} : memref<32x256xf32, #tpu.memory_space<vmem>>, vector<32x16xf32>,
      %37 = vector.extract_strided_slice %6 {offsets = [0, 5], sizes = [32, 1], strides = [1, 1]} : vector<32x16xf32> to vector<32x1xf32>
      %38 = vector.shape_cast %37 : vector<32x1xf32> to vector<32xf32>
      %39 = vector.shape_cast %38 : vector<32xf32> to vector<32x1xf32>
      %40 = vector.shape_cast %39 : vector<32x1xf32> to vector<32x1xf32>
      %41 = vector.broadcast %40 : vector<32x1xf32> to vector<32x16xf32>
      %c0_9 = arith.constant 0 : index
      %c80 = arith.constant 80 : index
      %42 = vector.load %arg3[%c0_9, %c80] : memref<32x256xf32, #tpu.memory_space<vmem>>, vector<32x16xf32>
      tpu.vector_store %arg3[%c0_9, %c80], %41 {strides = array<i32>} : memref<32x256xf32, #tpu.memory_space<vmem>>, vector<32x16xf32>,
      %43 = vector.extract_strided_slice %6 {offsets = [0, 6], sizes = [32, 1], strides = [1, 1]} : vector<32x16xf32> to vector<32x1xf32>
      %44 = vector.shape_cast %43 : vector<32x1xf32> to vector<32xf32>
      %45 = vector.shape_cast %44 : vector<32xf32> to vector<32x1xf32>
      %46 = vector.shape_cast %45 : vector<32x1xf32> to vector<32x1xf32>
      %47 = vector.broadcast %46 : vector<32x1xf32> to vector<32x16xf32>
      %c0_10 = arith.constant 0 : index
      %c96 = arith.constant 96 : index
      %48 = vector.load %arg3[%c0_10, %c96] : memref<32x256xf32, #tpu.memory_space<vmem>>, vector<32x16xf32>
      tpu.vector_store %arg3[%c0_10, %c96], %47 {strides = array<i32>} : memref<32x256xf32, #tpu.memory_space<vmem>>, vector<32x16xf32>,
      %49 = vector.extract_strided_slice %6 {offsets = [0, 7], sizes = [32, 1], strides = [1, 1]} : vector<32x16xf32> to vector<32x1xf32>
      %50 = vector.shape_cast %49 : vector<32x1xf32> to vector<32xf32>
      %51 = vector.shape_cast %50 : vector<32xf32> to vector<32x1xf32>
      %52 = vector.shape_cast %51 : vector<32x1xf32> to vector<32x1xf32>
      %53 = vector.broadcast %52 : vector<32x1xf32> to vector<32x16xf32>
      %c0_11 = arith.constant 0 : index
      %c112 = arith.constant 112 : index
      %54 = vector.load %arg3[%c0_11, %c112] : memref<32x256xf32, #tpu.memory_space<vmem>>, vector<32x16xf32>
      tpu.vector_store %arg3[%c0_11, %c112], %53 {strides = array<i32>} : memref<32x256xf32, #tpu.memory_space<vmem>>, vector<32x16xf32>,
      %55 = vector.extract_strided_slice %6 {offsets = [0, 8], sizes = [32, 1], strides = [1, 1]} : vector<32x16xf32> to vector<32x1xf32>
      %56 = vector.shape_cast %55 : vector<32x1xf32> to vector<32xf32>
      %57 = vector.shape_cast %56 : vector<32xf32> to vector<32x1xf32>
      %58 = vector.shape_cast %57 : vector<32x1xf32> to vector<32x1xf32>
      %59 = vector.broadcast %58 : vector<32x1xf32> to vector<32x16xf32>
      %c0_12 = arith.constant 0 : index
      %c128 = arith.constant 128 : index
      %60 = vector.load %arg3[%c0_12, %c128] : memref<32x256xf32, #tpu.memory_space<vmem>>, vector<32x16xf32>
      tpu.vector_store %arg3[%c0_12, %c128], %59 {strides = array<i32>} : memref<32x256xf32, #tpu.memory_space<vmem>>, vector<32x16xf32>,
      %61 = vector.extract_strided_slice %6 {offsets = [0, 9], sizes = [32, 1], strides = [1, 1]} : vector<32x16xf32> to vector<32x1xf32>
      %62 = vector.shape_cast %61 : vector<32x1xf32> to vector<32xf32>
      %63 = vector.shape_cast %62 : vector<32xf32> to vector<32x1xf32>
      %64 = vector.shape_cast %63 : vector<32x1xf32> to vector<32x1xf32>
      %65 = vector.broadcast %64 : vector<32x1xf32> to vector<32x16xf32>
      %c0_13 = arith.constant 0 : index
      %c144 = arith.constant 144 : index
      %66 = vector.load %arg3[%c0_13, %c144] : memref<32x256xf32, #tpu.memory_space<vmem>>, vector<32x16xf32>
      tpu.vector_store %arg3[%c0_13, %c144], %65 {strides = array<i32>} : memref<32x256xf32, #tpu.memory_space<vmem>>, vector<32x16xf32>,
      %67 = vector.extract_strided_slice %6 {offsets = [0, 10], sizes = [32, 1], strides = [1, 1]} : vector<32x16xf32> to vector<32x1xf32>
      %68 = vector.shape_cast %67 : vector<32x1xf32> to vector<32xf32>
      %69 = vector.shape_cast %68 : vector<32xf32> to vector<32x1xf32>
      %70 = vector.shape_cast %69 : vector<32x1xf32> to vector<32x1xf32>
      %71 = vector.broadcast %70 : vector<32x1xf32> to vector<32x16xf32>
      %c0_14 = arith.constant 0 : index
      %c160 = arith.constant 160 : index
      %72 = vector.load %arg3[%c0_14, %c160] : memref<32x256xf32, #tpu.memory_space<vmem>>, vector<32x16xf32>
      tpu.vector_store %arg3[%c0_14, %c160], %71 {strides = array<i32>} : memref<32x256xf32, #tpu.memory_space<vmem>>, vector<32x16xf32>,
      %73 = vector.extract_strided_slice %6 {offsets = [0, 11], sizes = [32, 1], strides = [1, 1]} : vector<32x16xf32> to vector<32x1xf32>
      %74 = vector.shape_cast %73 : vector<32x1xf32> to vector<32xf32>
      %75 = vector.shape_cast %74 : vector<32xf32> to vector<32x1xf32>
      %76 = vector.shape_cast %75 : vector<32x1xf32> to vector<32x1xf32>
      %77 = vector.broadcast %76 : vector<32x1xf32> to vector<32x16xf32>
      %c0_15 = arith.constant 0 : index
      %c176 = arith.constant 176 : index
      %78 = vector.load %arg3[%c0_15, %c176] : memref<32x256xf32, #tpu.memory_space<vmem>>, vector<32x16xf32>
      tpu.vector_store %arg3[%c0_15, %c176], %77 {strides = array<i32>} : memref<32x256xf32, #tpu.memory_space<vmem>>, vector<32x16xf32>,
      %79 = vector.extract_strided_slice %6 {offsets = [0, 12], sizes = [32, 1], strides = [1, 1]} : vector<32x16xf32> to vector<32x1xf32>
      %80 = vector.shape_cast %79 : vector<32x1xf32> to vector<32xf32>
      %81 = vector.shape_cast %80 : vector<32xf32> to vector<32x1xf32>
      %82 = vector.shape_cast %81 : vector<32x1xf32> to vector<32x1xf32>
      %83 = vector.broadcast %82 : vector<32x1xf32> to vector<32x16xf32>
      %c0_16 = arith.constant 0 : index
      %c192 = arith.constant 192 : index
      %84 = vector.load %arg3[%c0_16, %c192] : memref<32x256xf32, #tpu.memory_space<vmem>>, vector<32x16xf32>
      tpu.vector_store %arg3[%c0_16, %c192], %83 {strides = array<i32>} : memref<32x256xf32, #tpu.memory_space<vmem>>, vector<32x16xf32>,
      %85 = vector.extract_strided_slice %6 {offsets = [0, 13], sizes = [32, 1], strides = [1, 1]} : vector<32x16xf32> to vector<32x1xf32>
      %86 = vector.shape_cast %85 : vector<32x1xf32> to vector<32xf32>
      %87 = vector.shape_cast %86 : vector<32xf32> to vector<32x1xf32>
      %88 = vector.shape_cast %87 : vector<32x1xf32> to vector<32x1xf32>
      %89 = vector.broadcast %88 : vector<32x1xf32> to vector<32x16xf32>
      %c0_17 = arith.constant 0 : index
      %c208 = arith.constant 208 : index
      %90 = vector.load %arg3[%c0_17, %c208] : memref<32x256xf32, #tpu.memory_space<vmem>>, vector<32x16xf32>
      tpu.vector_store %arg3[%c0_17, %c208], %89 {strides = array<i32>} : memref<32x256xf32, #tpu.memory_space<vmem>>, vector<32x16xf32>,
      %91 = vector.extract_strided_slice %6 {offsets = [0, 14], sizes = [32, 1], strides = [1, 1]} : vector<32x16xf32> to vector<32x1xf32>
      %92 = vector.shape_cast %91 : vector<32x1xf32> to vector<32xf32>
      %93 = vector.shape_cast %92 : vector<32xf32> to vector<32x1xf32>
      %94 = vector.shape_cast %93 : vector<32x1xf32> to vector<32x1xf32>
      %95 = vector.broadcast %94 : vector<32x1xf32> to vector<32x16xf32>
      %c0_18 = arith.constant 0 : index
      %c224 = arith.constant 224 : index
      %96 = vector.load %arg3[%c0_18, %c224] : memref<32x256xf32, #tpu.memory_space<vmem>>, vector<32x16xf32>
      tpu.vector_store %arg3[%c0_18, %c224], %95 {strides = array<i32>} : memref<32x256xf32, #tpu.memory_space<vmem>>, vector<32x16xf32>,
      %97 = vector.extract_strided_slice %6 {offsets = [0, 15], sizes = [32, 1], strides = [1, 1]} : vector<32x16xf32> to vector<32x1xf32>
      %98 = vector.shape_cast %97 : vector<32x1xf32> to vector<32xf32>
      %99 = vector.shape_cast %98 : vector<32xf32> to vector<32x1xf32>
      %100 = vector.shape_cast %99 : vector<32x1xf32> to vector<32x1xf32>
      %101 = vector.broadcast %100 : vector<32x1xf32> to vector<32x16xf32>
      %c0_19 = arith.constant 0 : index
      %c240 = arith.constant 240 : index
      %102 = vector.load %arg3[%c0_19, %c240] : memref<32x256xf32, #tpu.memory_space<vmem>>, vector<32x16xf32>
      tpu.vector_store %arg3[%c0_19, %c240], %101 {strides = array<i32>} : memref<32x256xf32, #tpu.memory_space<vmem>>, vector<32x16xf32>,
    } else {
    }
    return
  }
  func.func @transform_0(%arg0: i32) -> (i32, i32) {
    %c0_i32 = arith.constant 0 : i32
    %c0_i32_0 = arith.constant 0 : i32
    %c0_i32_1 = arith.constant 0 : i32
    return %c0_i32, %c0_i32_0 : i32, i32
  }
  func.func @transform_1(%arg0: i32) -> (i32, i32) {
    %c0_i32 = arith.constant 0 : i32
    %c0_i32_0 = arith.constant 0 : i32
    %c0_i32_1 = arith.constant 0 : i32
    return %c0_i32, %c0_i32_0 : i32, i32
  }
  func.func @transform_2(%arg0: i32) -> (i32, i32) {
    %c0_i32 = arith.constant 0 : i32
    %c0_i32_0 = arith.constant 0 : i32
    return %arg0, %c0_i32 : i32, i32
  }
}

</mosaic_0001>

<llo_original>
// kernel: tpu_custom_call.1
$region0: #{tpu_custom_call.1}
  #allocation0 [shape = 'u32[]', space=smem, size = 0x4, offset = 0x4, fixed_abs, tag = 'smem constant byte address 0x4 - core index']
  #allocation1 [shape = 'u32[72,128]{1,0:T(1,128)}', space=vmem, size = 0x9000, scoped, tag = 'internal scratch']
  %s0 = inlined_call_operand.vmem [shape: f32[32,16], index: 0, kind: input, shape index: {}]
  %s1 = inlined_call_operand.vmem [shape: f32[32,16], index: 1, kind: input, shape index: {}]
  %s2 = inlined_call_operand.hbm [shape: f32[64,256], index: 2, kind: output, shape index: {}]
  %s3 = sld [smem:[#allocation0]]
  $region49: #{tpu_custom_call.1} parent=0
    _
  %s5 = ssub.s32 1, %s3
  %s6 = scalar_select 0, %s5, %s3
  $region1: #{tpu_custom_call.1} parent=0
    #allocation2 [shape = 'u8[65536]{0}', space=vmem, size = 0x10000, scoped, tag = 'output window, operand 0']
    #allocation3 [shape = 's32[2]{0}', space=sflag, size = 0x8, scoped, tag = 'scoped memory for tpu_custom_call.1']
    %7 = vsyncpa [#allocation3], 0
    %s8 = scalar_lea.sflag [#allocation3], 1
    %9 = vsyncpa %s8, 0
    loop: start=0, step=1, limit=4
    $region2: #{tpu_custom_call.1} parent=1 // loop_pre_header
      _
    $region3: #{tpu_custom_call.1} parent=1 // loop_header
      %s11 = sphi 0, %s15
      %p12 = scmp.ge.s32.totalorder %s11, 4
      %s19 = sphi 0, %s19
      %s21 = sphi 0, %s19
      %s22 = sphi 0, %s21
      %s36 = sphi 0, %s22
      %s40 = sphi 0, %s40
      %s42 = sphi 0, %s40
      %s43 = sphi 0, %s42
      %s57 = sphi 0, %s43
      %s63 = sphi 0, %s65
      %s66 = sphi 0, %s63
      %s67 = sphi 0, %s66
      %s83 = sphi 0, %s67
    $region4: #{tpu_custom_call.1} parent=1 // loop_header_branch
      %14 = sbr.rel (%p12) target = $region8
    $region5: #{tpu_custom_call.1} parent=1 // loop_body
      %s16 = ssub.s32 %s11, 1
      %s17 = ssub.s32 %s11, 2
      %s18 = sadd.s32 %s11, 1
      %s20 = sadd.s32 %s19, 1
      %p23 = scmp.eq.s32.totalorder %s11, 1
      %p24 = scmp.ne.s32.totalorder %s19, %s21
      %p25 = scmp.eq.s32.totalorder %s11, 0
      %p26 = por %p24, %p25
      %p27 = scmp.ne.s32.totalorder %s19, %s21
      %p28 = scmp.eq.s32.totalorder %s16, 1
      %p29 = por %p27, %p28
      %p30 = scmp.ne.s32.totalorder %s21, %s22
      %p31 = scmp.eq.s32.totalorder %s16, 0
      %p32 = por %p30, %p31
      %p33 = scmp.ne.s32.totalorder %s21, %s22
      %p34 = scmp.eq.s32.totalorder %s17, 1
      %p35 = por %p33, %p34
      %p37 = scmp.ne.s32.totalorder %s22, %s36
      %p38 = scmp.eq.s32.totalorder %s17, 0
      %p39 = por %p37, %p38
      %s41 = sadd.s32 %s40, 1
      %p44 = scmp.eq.s32.totalorder %s11, 1
      %p45 = scmp.ne.s32.totalorder %s40, %s42
      %p46 = scmp.eq.s32.totalorder %s11, 0
      %p47 = por %p45, %p46
      %p48 = scmp.ne.s32.totalorder %s40, %s42
      %p49 = scmp.eq.s32.totalorder %s16, 1
      %p50 = por %p48, %p49
      %p51 = scmp.ne.s32.totalorder %s42, %s43
      %p52 = scmp.eq.s32.totalorder %s16, 0
      %p53 = por %p51, %p52
      %p54 = scmp.ne.s32.totalorder %s42, %s43
      %p55 = scmp.eq.s32.totalorder %s17, 1
      %p56 = por %p54, %p55
      %p58 = scmp.ne.s32.totalorder %s43, %s57
      %p59 = scmp.eq.s32.totalorder %s17, 0
      %p60 = por %p58, %p59
      %s61 = ssub.s32 %s11, %s18
      %p62 = scmp.eq.s32.totalorder %s61, 0
      %s64 = sadd.s32 %s63, 1
      %s65 = scalar_select %p62, %s63, %s64
      %p68 = pneg %p62
      %p69 = scmp.eq.s32.totalorder %s11, 1
      %p70 = por %p68, %p69
      %p71 = scmp.ne.s32.totalorder %s63, %s66
      %p72 = scmp.eq.s32.totalorder %s11, 0
      %p73 = por %p71, %p72
      %p74 = scmp.ne.s32.totalorder %s63, %s66
      %p75 = scmp.eq.s32.totalorder %s16, 1
      %p76 = por %p74, %p75
      %p77 = scmp.ne.s32.totalorder %s66, %s67
      %p78 = scmp.eq.s32.totalorder %s16, 0
      %p79 = por %p77, %p78
      %p80 = scmp.ne.s32.totalorder %s66, %s67
      %p81 = scmp.eq.s32.totalorder %s17, 1
      %p82 = por %p80, %p81
      %p84 = scmp.ne.s32.totalorder %s67, %s83
      %p85 = scmp.eq.s32.totalorder %s17, 0
      %p86 = por %p84, %p85
      %p87 = scmp.le.s32.totalorder 1, %s11
      %p88 = scmp.lt.s32.totalorder %s11, 3
      %p89 = pnand %p87, %p88
      %p90 = pneg %p89
      // Predicated region
      $region9: #{tpu_custom_call.1} parent=5 // pred_check
        _
      $region10: #{tpu_custom_call.1} parent=5 // pred_check_branch
        %92 = sbr.rel (%p89) target = $region12
      $region11: #{tpu_custom_call.1} parent=5 // pred_region
        %s93 = ssub.s32 %s11, 1
        // Predicated region
        $region13: #{tpu_custom_call.1} parent=11 // pred_check
          %p94 = pneg %p32
        $region14: #{tpu_custom_call.1} parent=11 // pred_check_branch
          %96 = sbr.rel (%p94) target = $region16
        $region15: #{tpu_custom_call.1} parent=11 // pred_region
          _
        $region16: #{tpu_custom_call.1} parent=11 // pred_fallthru
          _
        // Predicated region
        $region17: #{tpu_custom_call.1} parent=11 // pred_check
          %p97 = pneg %p53
        $region18: #{tpu_custom_call.1} parent=11 // pred_check_branch
          %99 = sbr.rel (%p97) target = $region20
        $region19: #{tpu_custom_call.1} parent=11 // pred_region
          _
        $region20: #{tpu_custom_call.1} parent=11 // pred_fallthru
          _
      $region12: #{tpu_custom_call.1} parent=5 // pred_fallthru
        _
      %p100 = scmp.lt.s32.totalorder %s11, 2
      // Predicated region
      $region21: #{tpu_custom_call.1} parent=5 // pred_check
        %p101 = pneg %p100
      $region22: #{tpu_custom_call.1} parent=5 // pred_check_branch
        %103 = sbr.rel (%p101) target = $region24
      $region23: #{tpu_custom_call.1} parent=5 // pred_region
        _
      $region24: #{tpu_custom_call.1} parent=5 // pred_fallthru
        _
      %p104 = scmp.le.s32.totalorder 1, %s11
      %p105 = scmp.lt.s32.totalorder %s11, 3
      %p106 = pnand %p104, %p105
      %p107 = pneg %p106
      // Predicated region
      $region25: #{tpu_custom_call.1} parent=5 // pred_check
        _
      $region26: #{tpu_custom_call.1} parent=5 // pred_check_branch
        %109 = sbr.rel (%p106) target = $region28
      $region27: #{tpu_custom_call.1} parent=5 // pred_region
        %s110 = ssub.s32 %s11, 1
        %p111 = pneg %p32
        %p112 = pneg %p29
        %p113 = pneg %p53
        %p114 = pneg %p50
        %p115 = pneg %p79
        %p116 = pneg %p76
        %s117 = sand.u32 %s66, 1
        %s118 = scalar_lea.sflag [#allocation3], %s117
        %s119 = sand.u32 %s66, 1
        %s120 = smul.addr %s119, 64
        %s121 = scalar_lea.vmem [#allocation2], %s120
        %s122 = smul.u32 4, %s16
        %p123 = scmp.eq.s32.totalorder %s16, 0
        // Predicated region
        $region29: #{tpu_custom_call.1} parent=27 // pred_check
          %p124 = pneg %p123
        $region30: #{tpu_custom_call.1} parent=27 // pred_check_branch
          %126 = sbr.rel (%p124) target = $region32
        $region31: #{tpu_custom_call.1} parent=27 // pred_region
          %v127 = vld [vmem:[%s0] sm:$0xff]
          %v128 = vld [vmem:[%s0 + $0x8] sm:$0xff]
          %v129 = vld [vmem:[%s0 + $0x10] sm:$0xff]
          %v130 = vld [vmem:[%s0 + $0x18] sm:$0xff]
          %vm131 = vcmask 130048
          %132 = vst.msk [vmem:[%s121] sm:$0xff] %vm131, %v127
          %133 = vst.msk [vmem:[%s121 + $0x10] sm:$0xff] %vm131, %v128
          %134 = vst.msk [vmem:[%s121 + $0x20] sm:$0xff] %vm131, %v129
          %135 = vst.msk [vmem:[%s121 + $0x30] sm:$0xff] %vm131, %v130
          %140 = vrot.lane.b32.xlu0 %v127, 16
          %v141 = vpop.permute.xlu0 %140
          %142 = vrot.lane.b32.xlu0 %v128, 16
          %v143 = vpop.permute.xlu0 %142
          %144 = vrot.lane.b32.xlu0 %v129, 16
          %v145 = vpop.permute.xlu0 %144
          %146 = vrot.lane.b32.xlu0 %v130, 16
          %v147 = vpop.permute.xlu0 %146
          %vm152 = vcmask 261248
          %153 = vst.msk [vmem:[%s121] sm:$0xff] %vm152, %v141
          %154 = vst.msk [vmem:[%s121 + $0x10] sm:$0xff] %vm152, %v143
          %155 = vst.msk [vmem:[%s121 + $0x20] sm:$0xff] %vm152, %v145
          %156 = vst.msk [vmem:[%s121 + $0x30] sm:$0xff] %vm152, %v147
          %157 = vrot.lane.b32.xlu0 %v127, 32
          %v158 = vpop.permute.xlu0 %157
          %159 = vrot.lane.b32.xlu0 %v128, 32
          %v160 = vpop.permute.xlu0 %159
          %161 = vrot.lane.b32.xlu0 %v129, 32
          %v162 = vpop.permute.xlu0 %161
          %163 = vrot.lane.b32.xlu0 %v130, 32
          %v164 = vpop.permute.xlu0 %163
          %vm169 = vcmask 392448
          %170 = vst.msk [vmem:[%s121] sm:$0xff] %vm169, %v158
          %171 = vst.msk [vmem:[%s121 + $0x10] sm:$0xff] %vm169, %v160
          %172 = vst.msk [vmem:[%s121 + $0x20] sm:$0xff] %vm169, %v162
          %173 = vst.msk [vmem:[%s121 + $0x30] sm:$0xff] %vm169, %v164
          %174 = vrot.lane.b32.xlu0 %v127, 48
          %v175 = vpop.permute.xlu0 %174
          %176 = vrot.lane.b32.xlu0 %v128, 48
          %v177 = vpop.permute.xlu0 %176
          %178 = vrot.lane.b32.xlu0 %v129, 48
          %v179 = vpop.permute.xlu0 %178
          %180 = vrot.lane.b32.xlu0 %v130, 48
          %v181 = vpop.permute.xlu0 %180
          %vm186 = vcmask 523648
          %187 = vst.msk [vmem:[%s121] sm:$0xff] %vm186, %v175
          %188 = vst.msk [vmem:[%s121 + $0x10] sm:$0xff] %vm186, %v177
          %189 = vst.msk [vmem:[%s121 + $0x20] sm:$0xff] %vm186, %v179
          %190 = vst.msk [vmem:[%s121 + $0x30] sm:$0xff] %vm186, %v181
          %191 = vrot.lane.b32.xlu0 %v127, 64
          %v192 = vpop.permute.xlu0 %191
          %193 = vrot.lane.b32.xlu0 %v128, 64
          %v194 = vpop.permute.xlu0 %193
          %195 = vrot.lane.b32.xlu0 %v129, 64
          %v196 = vpop.permute.xlu0 %195
          %197 = vrot.lane.b32.xlu0 %v130, 64
          %v198 = vpop.permute.xlu0 %197
          %vm203 = vcmask 654848
          %204 = vst.msk [vmem:[%s121] sm:$0xff] %vm203, %v192
          %205 = vst.msk [vmem:[%s121 + $0x10] sm:$0xff] %vm203, %v194
          %206 = vst.msk [vmem:[%s121 + $0x20] sm:$0xff] %vm203, %v196
          %207 = vst.msk [vmem:[%s121 + $0x30] sm:$0xff] %vm203, %v198
          %208 = vrot.lane.b32.xlu0 %v127, 80
          %v209 = vpop.permute.xlu0 %208
          %210 = vrot.lane.b32.xlu0 %v128, 80
          %v211 = vpop.permute.xlu0 %210
          %212 = vrot.lane.b32.xlu0 %v129, 80
          %v213 = vpop.permute.xlu0 %212
          %214 = vrot.lane.b32.xlu0 %v130, 80
          %v215 = vpop.permute.xlu0 %214
          %vm220 = vcmask 786048
          %221 = vst.msk [vmem:[%s121] sm:$0xff] %vm220, %v209
          %222 = vst.msk [vmem:[%s121 + $0x10] sm:$0xff] %vm220, %v211
          %223 = vst.msk [vmem:[%s121 + $0x20] sm:$0xff] %vm220, %v213
          %224 = vst.msk [vmem:[%s121 + $0x30] sm:$0xff] %vm220, %v215
          %225 = vrot.lane.b32.xlu0 %v127, 96
          %v226 = vpop.permute.xlu0 %225
          %227 = vrot.lane.b32.xlu0 %v128, 96
          %v228 = vpop.permute.xlu0 %227
          %229 = vrot.lane.b32.xlu0 %v129, 96
          %v230 = vpop.permute.xlu0 %229
          %231 = vrot.lane.b32.xlu0 %v130, 96
          %v232 = vpop.permute.xlu0 %231
          %vm237 = vcmask 917248
          %238 = vst.msk [vmem:[%s121] sm:$0xff] %vm237, %v226
          %239 = vst.msk [vmem:[%s121 + $0x10] sm:$0xff] %vm237, %v228
          %240 = vst.msk [vmem:[%s121 + $0x20] sm:$0xff] %vm237, %v230
          %241 = vst.msk [vmem:[%s121 + $0x30] sm:$0xff] %vm237, %v232
          %242 = vrot.lane.b32.xlu0 %v127, 112
          %v243 = vpop.permute.xlu0 %242
          %244 = vrot.lane.b32.xlu0 %v128, 112
          %v245 = vpop.permute.xlu0 %244
          %246 = vrot.lane.b32.xlu0 %v129, 112
          %v247 = vpop.permute.xlu0 %246
          %248 = vrot.lane.b32.xlu0 %v130, 112
          %v249 = vpop.permute.xlu0 %248
          %vm254 = vcmask 1048448
          %255 = vst.msk [vmem:[%s121] sm:$0xff] %vm254, %v243
          %256 = vst.msk [vmem:[%s121 + $0x10] sm:$0xff] %vm254, %v245
          %257 = vst.msk [vmem:[%s121 + $0x20] sm:$0xff] %vm254, %v247
          %258 = vst.msk [vmem:[%s121 + $0x30] sm:$0xff] %vm254, %v249
          %259 = vst.msk [vmem:[%s121 + $0x8] sm:$0xff] %vm131, %v127
          %260 = vst.msk [vmem:[%s121 + $0x18] sm:$0xff] %vm131, %v128
          %261 = vst.msk [vmem:[%s121 + $0x28] sm:$0xff] %vm131, %v129
          %262 = vst.msk [vmem:[%s121 + $0x38] sm:$0xff] %vm131, %v130
          %263 = vst.msk [vmem:[%s121 + $0x8] sm:$0xff] %vm152, %v141
          %264 = vst.msk [vmem:[%s121 + $0x18] sm:$0xff] %vm152, %v143
          %265 = vst.msk [vmem:[%s121 + $0x28] sm:$0xff] %vm152, %v145
          %266 = vst.msk [vmem:[%s121 + $0x38] sm:$0xff] %vm152, %v147
          %267 = vst.msk [vmem:[%s121 + $0x8] sm:$0xff] %vm169, %v158
          %268 = vst.msk [vmem:[%s121 + $0x18] sm:$0xff] %vm169, %v160
          %269 = vst.msk [vmem:[%s121 + $0x28] sm:$0xff] %vm169, %v162
          %270 = vst.msk [vmem:[%s121 + $0x38] sm:$0xff] %vm169, %v164
          %271 = vst.msk [vmem:[%s121 + $0x8] sm:$0xff] %vm186, %v175
          %272 = vst.msk [vmem:[%s121 + $0x18] sm:$0xff] %vm186, %v177
          %273 = vst.msk [vmem:[%s121 + $0x28] sm:$0xff] %vm186, %v179
          %274 = vst.msk [vmem:[%s121 + $0x38] sm:$0xff] %vm186, %v181
          %275 = vst.msk [vmem:[%s121 + $0x8] sm:$0xff] %vm203, %v192
          %276 = vst.msk [vmem:[%s121 + $0x18] sm:$0xff] %vm203, %v194
          %277 = vst.msk [vmem:[%s121 + $0x28] sm:$0xff] %vm203, %v196
          %278 = vst.msk [vmem:[%s121 + $0x38] sm:$0xff] %vm203, %v198
          %279 = vst.msk [vmem:[%s121 + $0x8] sm:$0xff] %vm220, %v209
          %280 = vst.msk [vmem:[%s121 + $0x18] sm:$0xff] %vm220, %v211
          %281 = vst.msk [vmem:[%s121 + $0x28] sm:$0xff] %vm220, %v213
          %282 = vst.msk [vmem:[%s121 + $0x38] sm:$0xff] %vm220, %v215
          %283 = vst.msk [vmem:[%s121 + $0x8] sm:$0xff] %vm237, %v226
          %284 = vst.msk [vmem:[%s121 + $0x18] sm:$0xff] %vm237, %v228
          %285 = vst.msk [vmem:[%s121 + $0x28] sm:$0xff] %vm237, %v230
          %286 = vst.msk [vmem:[%s121 + $0x38] sm:$0xff] %vm237, %v232
          %287 = vst.msk [vmem:[%s121 + $0x8] sm:$0xff] %vm254, %v243
          %288 = vst.msk [vmem:[%s121 + $0x18] sm:$0xff] %vm254, %v245
          %289 = vst.msk [vmem:[%s121 + $0x28] sm:$0xff] %vm254, %v247
          %290 = vst.msk [vmem:[%s121 + $0x38] sm:$0xff] %vm254, %v249
        $region32: #{tpu_custom_call.1} parent=27 // pred_fallthru
          _
        %p291 = scmp.eq.s32.totalorder %s16, 1
        // Predicated region
        $region33: #{tpu_custom_call.1} parent=27 // pred_check
          %p292 = pneg %p291
        $region34: #{tpu_custom_call.1} parent=27 // pred_check_branch
          %294 = sbr.rel (%p292) target = $region36
        $region35: #{tpu_custom_call.1} parent=27 // pred_region
          %v295 = vld [vmem:[%s1] sm:$0xff]
          %v296 = vld [vmem:[%s1 + $0x8] sm:$0xff]
          %v297 = vld [vmem:[%s1 + $0x10] sm:$0xff]
          %v298 = vld [vmem:[%s1 + $0x18] sm:$0xff]
          %300 = vset.pattern.permute.xlu0 0
          %301 = vperm.xlu0 %300, %v295
          %v302 = vpop.permute.xlu0 %301
          %305 = vset.pattern.permute.xlu0 0
          %306 = vperm.xlu0 %305, %v296
          %v307 = vpop.permute.xlu0 %306
          %310 = vset.pattern.permute.xlu0 0
          %311 = vperm.xlu0 %310, %v297
          %v312 = vpop.permute.xlu0 %311
          %315 = vset.pattern.permute.xlu0 0
          %316 = vperm.xlu0 %315, %v298
          %v317 = vpop.permute.xlu0 %316
          %vm319 = vcmask 130048
          %320 = vst.msk [vmem:[%s121] sm:$0xff] %vm319, %v302
          %321 = vst.msk [vmem:[%s121 + $0x10] sm:$0xff] %vm319, %v307
          %322 = vst.msk [vmem:[%s121 + $0x20] sm:$0xff] %vm319, %v312
          %323 = vst.msk [vmem:[%s121 + $0x30] sm:$0xff] %vm319, %v317
          %324 = vset.pattern.permute.xlu0 1
          %325 = vperm.xlu0 %324, %v295
          %v326 = vpop.permute.xlu0 %325
          %328 = vset.pattern.permute.xlu0 1
          %329 = vperm.xlu0 %328, %v296
          %v330 = vpop.permute.xlu0 %329
          %332 = vset.pattern.permute.xlu0 1
          %333 = vperm.xlu0 %332, %v297
          %v334 = vpop.permute.xlu0 %333
          %336 = vset.pattern.permute.xlu0 1
          %337 = vperm.xlu0 %336, %v298
          %v338 = vpop.permute.xlu0 %337
          %vm340 = vcmask 261248
          %341 = vst.msk [vmem:[%s121] sm:$0xff] %vm340, %v326
          %342 = vst.msk [vmem:[%s121 + $0x10] sm:$0xff] %vm340, %v330
          %343 = vst.msk [vmem:[%s121 + $0x20] sm:$0xff] %vm340, %v334
          %344 = vst.msk [vmem:[%s121 + $0x30] sm:$0xff] %vm340, %v338
          %345 = vset.pattern.permute.xlu0 2
          %346 = vperm.xlu0 %345, %v295
          %v347 = vpop.permute.xlu0 %346
          %349 = vset.pattern.permute.xlu0 2
          %350 = vperm.xlu0 %349, %v296
          %v351 = vpop.permute.xlu0 %350
          %353 = vset.pattern.permute.xlu0 2
          %354 = vperm.xlu0 %353, %v297
          %v355 = vpop.permute.xlu0 %354
          %357 = vset.pattern.permute.xlu0 2
          %358 = vperm.xlu0 %357, %v298
          %v359 = vpop.permute.xlu0 %358
          %vm361 = vcmask 392448
          %362 = vst.msk [vmem:[%s121] sm:$0xff] %vm361, %v347
          %363 = vst.msk [vmem:[%s121 + $0x10] sm:$0xff] %vm361, %v351
          %364 = vst.msk [vmem:[%s121 + $0x20] sm:$0xff] %vm361, %v355
          %365 = vst.msk [vmem:[%s121 + $0x30] sm:$0xff] %vm361, %v359
          %366 = vset.pattern.permute.xlu0 3
          %367 = vperm.xlu0 %366, %v295
          %v368 = vpop.permute.xlu0 %367
          %370 = vset.pattern.permute.xlu0 3
          %371 = vperm.xlu0 %370, %v296
          %v372 = vpop.permute.xlu0 %371
          %374 = vset.pattern.permute.xlu0 3
          %375 = vperm.xlu0 %374, %v297
          %v376 = vpop.permute.xlu0 %375
          %378 = vset.pattern.permute.xlu0 3
          %379 = vperm.xlu0 %378, %v298
          %v380 = vpop.permute.xlu0 %379
          %vm382 = vcmask 523648
          %383 = vst.msk [vmem:[%s121] sm:$0xff] %vm382, %v368
          %384 = vst.msk [vmem:[%s121 + $0x10] sm:$0xff] %vm382, %v372
          %385 = vst.msk [vmem:[%s121 + $0x20] sm:$0xff] %vm382, %v376
          %386 = vst.msk [vmem:[%s121 + $0x30] sm:$0xff] %vm382, %v380
          %387 = vset.pattern.permute.xlu0 4
          %388 = vperm.xlu0 %387, %v295
          %v389 = vpop.permute.xlu0 %388
          %391 = vset.pattern.permute.xlu0 4
          %392 = vperm.xlu0 %391, %v296
          %v393 = vpop.permute.xlu0 %392
          %395 = vset.pattern.permute.xlu0 4
          %396 = vperm.xlu0 %395, %v297
          %v397 = vpop.permute.xlu0 %396
          %399 = vset.pattern.permute.xlu0 4
          %400 = vperm.xlu0 %399, %v298
          %v401 = vpop.permute.xlu0 %400
          %vm403 = vcmask 654848
          %404 = vst.msk [vmem:[%s121] sm:$0xff] %vm403, %v389
          %405 = vst.msk [vmem:[%s121 + $0x10] sm:$0xff] %vm403, %v393
          %406 = vst.msk [vmem:[%s121 + $0x20] sm:$0xff] %vm403, %v397
          %407 = vst.msk [vmem:[%s121 + $0x30] sm:$0xff] %vm403, %v401
          %408 = vset.pattern.permute.xlu0 5
          %409 = vperm.xlu0 %408, %v295
          %v410 = vpop.permute.xlu0 %409
          %412 = vset.pattern.permute.xlu0 5
          %413 = vperm.xlu0 %412, %v296
          %v414 = vpop.permute.xlu0 %413
          %416 = vset.pattern.permute.xlu0 5
          %417 = vperm.xlu0 %416, %v297
          %v418 = vpop.permute.xlu0 %417
          %420 = vset.pattern.permute.xlu0 5
          %421 = vperm.xlu0 %420, %v298
          %v422 = vpop.permute.xlu0 %421
          %vm424 = vcmask 786048
          %425 = vst.msk [vmem:[%s121] sm:$0xff] %vm424, %v410
          %426 = vst.msk [vmem:[%s121 + $0x10] sm:$0xff] %vm424, %v414
          %427 = vst.msk [vmem:[%s121 + $0x20] sm:$0xff] %vm424, %v418
          %428 = vst.msk [vmem:[%s121 + $0x30] sm:$0xff] %vm424, %v422
          %429 = vset.pattern.permute.xlu0 6
          %430 = vperm.xlu0 %429, %v295
          %v431 = vpop.permute.xlu0 %430
          %433 = vset.pattern.permute.xlu0 6
          %434 = vperm.xlu0 %433, %v296
          %v435 = vpop.permute.xlu0 %434
          %437 = vset.pattern.permute.xlu0 6
          %438 = vperm.xlu0 %437, %v297
          %v439 = vpop.permute.xlu0 %438
          %441 = vset.pattern.permute.xlu0 6
          %442 = vperm.xlu0 %441, %v298
          %v443 = vpop.permute.xlu0 %442
          %vm445 = vcmask 917248
          %446 = vst.msk [vmem:[%s121] sm:$0xff] %vm445, %v431
          %447 = vst.msk [vmem:[%s121 + $0x10] sm:$0xff] %vm445, %v435
          %448 = vst.msk [vmem:[%s121 + $0x20] sm:$0xff] %vm445, %v439
          %449 = vst.msk [vmem:[%s121 + $0x30] sm:$0xff] %vm445, %v443
          %450 = vset.pattern.permute.xlu0 7
          %451 = vperm.xlu0 %450, %v295
          %v452 = vpop.permute.xlu0 %451
          %454 = vset.pattern.permute.xlu0 7
          %455 = vperm.xlu0 %454, %v296
          %v456 = vpop.permute.xlu0 %455
          %458 = vset.pattern.permute.xlu0 7
          %459 = vperm.xlu0 %458, %v297
          %v460 = vpop.permute.xlu0 %459
          %462 = vset.pattern.permute.xlu0 7
          %463 = vperm.xlu0 %462, %v298
          %v464 = vpop.permute.xlu0 %463
          %vm466 = vcmask 1048448
          %467 = vst.msk [vmem:[%s121] sm:$0xff] %vm466, %v452
          %468 = vst.msk [vmem:[%s121 + $0x10] sm:$0xff] %vm466, %v456
          %469 = vst.msk [vmem:[%s121 + $0x20] sm:$0xff] %vm466, %v460
          %470 = vst.msk [vmem:[%s121 + $0x30] sm:$0xff] %vm466, %v464
          %471 = vset.pattern.permute.xlu0 8
          %472 = vperm.xlu0 %471, %v295
          %v473 = vpop.permute.xlu0 %472
          %475 = vset.pattern.permute.xlu0 8
          %476 = vperm.xlu0 %475, %v296
          %v477 = vpop.permute.xlu0 %476
          %479 = vset.pattern.permute.xlu0 8
          %480 = vperm.xlu0 %479, %v297
          %v481 = vpop.permute.xlu0 %480
          %483 = vset.pattern.permute.xlu0 8
          %484 = vperm.xlu0 %483, %v298
          %v485 = vpop.permute.xlu0 %484
          %487 = vst.msk [vmem:[%s121 + $0x8] sm:$0xff] %vm319, %v473
          %488 = vst.msk [vmem:[%s121 + $0x18] sm:$0xff] %vm319, %v477
          %489 = vst.msk [vmem:[%s121 + $0x28] sm:$0xff] %vm319, %v481
          %490 = vst.msk [vmem:[%s121 + $0x38] sm:$0xff] %vm319, %v485
          %491 = vset.pattern.permute.xlu0 9
          %492 = vperm.xlu0 %491, %v295
          %v493 = vpop.permute.xlu0 %492
          %495 = vset.pattern.permute.xlu0 9
          %496 = vperm.xlu0 %495, %v296
          %v497 = vpop.permute.xlu0 %496
          %499 = vset.pattern.permute.xlu0 9
          %500 = vperm.xlu0 %499, %v297
          %v501 = vpop.permute.xlu0 %500
          %503 = vset.pattern.permute.xlu0 9
          %504 = vperm.xlu0 %503, %v298
          %v505 = vpop.permute.xlu0 %504
          %507 = vst.msk [vmem:[%s121 + $0x8] sm:$0xff] %vm340, %v493
          %508 = vst.msk [vmem:[%s121 + $0x18] sm:$0xff] %vm340, %v497
          %509 = vst.msk [vmem:[%s121 + $0x28] sm:$0xff] %vm340, %v501
          %510 = vst.msk [vmem:[%s121 + $0x38] sm:$0xff] %vm340, %v505
          %511 = vset.pattern.permute.xlu0 10
          %512 = vperm.xlu0 %511, %v295
          %v513 = vpop.permute.xlu0 %512
          %515 = vset.pattern.permute.xlu0 10
          %516 = vperm.xlu0 %515, %v296
          %v517 = vpop.permute.xlu0 %516
          %519 = vset.pattern.permute.xlu0 10
          %520 = vperm.xlu0 %519, %v297
          %v521 = vpop.permute.xlu0 %520
          %523 = vset.pattern.permute.xlu0 10
          %524 = vperm.xlu0 %523, %v298
          %v525 = vpop.permute.xlu0 %524
          %527 = vst.msk [vmem:[%s121 + $0x8] sm:$0xff] %vm361, %v513
          %528 = vst.msk [vmem:[%s121 + $0x18] sm:$0xff] %vm361, %v517
          %529 = vst.msk [vmem:[%s121 + $0x28] sm:$0xff] %vm361, %v521
          %530 = vst.msk [vmem:[%s121 + $0x38] sm:$0xff] %vm361, %v525
          %531 = vset.pattern.permute.xlu0 11
          %532 = vperm.xlu0 %531, %v295
          %v533 = vpop.permute.xlu0 %532
          %535 = vset.pattern.permute.xlu0 11
          %536 = vperm.xlu0 %535, %v296
          %v537 = vpop.permute.xlu0 %536
          %539 = vset.pattern.permute.xlu0 11
          %540 = vperm.xlu0 %539, %v297
          %v541 = vpop.permute.xlu0 %540
          %543 = vset.pattern.permute.xlu0 11
          %544 = vperm.xlu0 %543, %v298
          %v545 = vpop.permute.xlu0 %544
          %547 = vst.msk [vmem:[%s121 + $0x8] sm:$0xff] %vm382, %v533
          %548 = vst.msk [vmem:[%s121 + $0x18] sm:$0xff] %vm382, %v537
          %549 = vst.msk [vmem:[%s121 + $0x28] sm:$0xff] %vm382, %v541
          %550 = vst.msk [vmem:[%s121 + $0x38] sm:$0xff] %vm382, %v545
          %551 = vset.pattern.permute.xlu0 12
          %552 = vperm.xlu0 %551, %v295
          %v553 = vpop.permute.xlu0 %552
          %555 = vset.pattern.permute.xlu0 12
          %556 = vperm.xlu0 %555, %v296
          %v557 = vpop.permute.xlu0 %556
          %559 = vset.pattern.permute.xlu0 12
          %560 = vperm.xlu0 %559, %v297
          %v561 = vpop.permute.xlu0 %560
          %563 = vset.pattern.permute.xlu0 12
          %564 = vperm.xlu0 %563, %v298
          %v565 = vpop.permute.xlu0 %564
          %567 = vst.msk [vmem:[%s121 + $0x8] sm:$0xff] %vm403, %v553
          %568 = vst.msk [vmem:[%s121 + $0x18] sm:$0xff] %vm403, %v557
          %569 = vst.msk [vmem:[%s121 + $0x28] sm:$0xff] %vm403, %v561
          %570 = vst.msk [vmem:[%s121 + $0x38] sm:$0xff] %vm403, %v565
          %571 = vset.pattern.permute.xlu0 13
          %572 = vperm.xlu0 %571, %v295
          %v573 = vpop.permute.xlu0 %572
          %575 = vset.pattern.permute.xlu0 13
          %576 = vperm.xlu0 %575, %v296
          %v577 = vpop.permute.xlu0 %576
          %579 = vset.pattern.permute.xlu0 13
          %580 = vperm.xlu0 %579, %v297
          %v581 = vpop.permute.xlu0 %580
          %583 = vset.pattern.permute.xlu0 13
          %584 = vperm.xlu0 %583, %v298
          %v585 = vpop.permute.xlu0 %584
          %587 = vst.msk [vmem:[%s121 + $0x8] sm:$0xff] %vm424, %v573
          %588 = vst.msk [vmem:[%s121 + $0x18] sm:$0xff] %vm424, %v577
          %589 = vst.msk [vmem:[%s121 + $0x28] sm:$0xff] %vm424, %v581
          %590 = vst.msk [vmem:[%s121 + $0x38] sm:$0xff] %vm424, %v585
          %591 = vset.pattern.permute.xlu0 14
          %592 = vperm.xlu0 %591, %v295
          %v593 = vpop.permute.xlu0 %592
          %595 = vset.pattern.permute.xlu0 14
          %596 = vperm.xlu0 %595, %v296
          %v597 = vpop.permute.xlu0 %596
          %599 = vset.pattern.permute.xlu0 14
          %600 = vperm.xlu0 %599, %v297
          %v601 = vpop.permute.xlu0 %600
          %603 = vset.pattern.permute.xlu0 14
          %604 = vperm.xlu0 %603, %v298
          %v605 = vpop.permute.xlu0 %604
          %607 = vst.msk [vmem:[%s121 + $0x8] sm:$0xff] %vm445, %v593
          %608 = vst.msk [vmem:[%s121 + $0x18] sm:$0xff] %vm445, %v597
          %609 = vst.msk [vmem:[%s121 + $0x28] sm:$0xff] %vm445, %v601
          %610 = vst.msk [vmem:[%s121 + $0x38] sm:$0xff] %vm445, %v605
          %611 = vset.pattern.permute.xlu0 15
          %612 = vperm.xlu0 %611, %v295
          %v613 = vpop.permute.xlu0 %612
          %615 = vset.pattern.permute.xlu0 15
          %616 = vperm.xlu0 %615, %v296
          %v617 = vpop.permute.xlu0 %616
          %619 = vset.pattern.permute.xlu0 15
          %620 = vperm.xlu0 %619, %v297
          %v621 = vpop.permute.xlu0 %620
          %623 = vset.pattern.permute.xlu0 15
          %624 = vperm.xlu0 %623, %v298
          %v625 = vpop.permute.xlu0 %624
          %627 = vst.msk [vmem:[%s121 + $0x8] sm:$0xff] %vm466, %v613
          %628 = vst.msk [vmem:[%s121 + $0x18] sm:$0xff] %vm466, %v617
          %629 = vst.msk [vmem:[%s121 + $0x28] sm:$0xff] %vm466, %v621
          %630 = vst.msk [vmem:[%s121 + $0x38] sm:$0xff] %vm466, %v625
        $region36: #{tpu_custom_call.1} parent=27 // pred_fallthru
          _
        %s631 = sand.u32 %s66, 1
        %s632 = scalar_lea.sflag [#allocation3], %s631
        %s633 = sand.u32 %s66, 1
        %s634 = smul.addr %s633, 64
        %s635 = scalar_lea.vmem [#allocation2], %s634
        // Predicated region
        $region37: #{tpu_custom_call.1} parent=27 // pred_check
          %p636 = pneg %p76
        $region38: #{tpu_custom_call.1} parent=27 // pred_check_branch
          %638 = sbr.rel (%p636) target = $region40
        $region39: #{tpu_custom_call.1} parent=27 // pred_region
          %s639 = smul.u32 4, %s16
          %641 = vsyncadd %s632, 0
          %s642 = smul.addr %s639, 2
          %s643 = smul.addr %s642, 8
          %s644 = scalar_lea.hbm %s2, %s643
          %s645 = sshll.u32 %s635, 4
          %s646 = int_to_ptr.vmem [resolvable:$true] %s645
          %s647 = sshll.u32 %s644, 4
          %s648 = int_to_ptr.hbm [resolvable:$true] %s647
          %653 = dma.vmem_to_hbm [thread:$0]  %s646, 1024, %s648, %s632, 256, 256, 16
        $region40: #{tpu_custom_call.1} parent=27 // pred_fallthru
          _
      $region28: #{tpu_custom_call.1} parent=5 // pred_fallthru
        _
      %p654 = scmp.le.s32.totalorder 2, %s11
      // Predicated region
      $region41: #{tpu_custom_call.1} parent=5 // pred_check
        %p655 = pneg %p654
      $region42: #{tpu_custom_call.1} parent=5 // pred_check_branch
        %657 = sbr.rel (%p655) target = $region44
      $region43: #{tpu_custom_call.1} parent=5 // pred_region
        %s658 = ssub.s32 %s11, 2
        // Predicated region
        $region45: #{tpu_custom_call.1} parent=43 // pred_check
          %p659 = pneg %p82
        $region46: #{tpu_custom_call.1} parent=43 // pred_check_branch
          %661 = sbr.rel (%p659) target = $region48
        $region47: #{tpu_custom_call.1} parent=43 // pred_region
          %s662 = sand.u32 %s67, 1
          %s663 = scalar_lea.sflag [#allocation3], %s662
          %s664 = sand.u32 %s67, 1
          %s665 = smul.addr %s664, 64
          %s666 = scalar_lea.vmem [#allocation2], %s665
          %668 = dma.done %s663, 1024
        $region48: #{tpu_custom_call.1} parent=43 // pred_fallthru
          _
      $region44: #{tpu_custom_call.1} parent=5 // pred_fallthru
        _
    $region6: #{tpu_custom_call.1} parent=1 // loop_footer
      %s15 = sadd.s32 1, %s11
    $region7: #{tpu_custom_call.1} parent=1 // loop_footer_branch
      %10 = sbr.rel target = $region3
    $region8: #{tpu_custom_call.1} parent=1 // loop_exit
      _
    %669 = vsyncpa [#allocation3], 1
    %s670 = scalar_lea.sflag [#allocation3], 1
    %671 = vsyncpa %s670, 1

</llo_original>
